<compile_context>
chip_gen: v7x
topology: tpu7x:2x2x1
jax: 0.10.0
libtpu: 0.0.40
codegen_flags: <defaults>
</compile_context>

<pallas_src>
import math

import jax
import jax.numpy as jnp
from jax.experimental import pallas as pl
from jax.experimental.pallas import tpu as pltpu


# ----------------------------------------------------------------------------
# Pallas kernel: one (tm x Cin) @ (Cin x tc) bf16 matmul + fused f32 bias
# ----------------------------------------------------------------------------
def _outconv_kernel(x_ref, w_ref, b_ref, o_ref):
    # x_ref: (tm, Cin)   f32   activation rows for this tile
    # w_ref: (Cin, tc)   bf16  weight tile (pre-cast, Cout padded to lanes)
    # b_ref: (1, tc)     f32   bias tile
    # o_ref: (tm, tc)    f32   output tile (lane-dense, unmasked stores)
    x = x_ref[...].astype(jnp.bfloat16)                       # VPU cast in VMEM
    acc = jnp.dot(x, w_ref[...], preferred_element_type=jnp.float32)  # MXU
    o_ref[...] = acc + b_ref[...]                             # fused bias add


# ----------------------------------------------------------------------------
# Wrapper: NCHW in / NCHW out, exactly like nn.Conv2d(k=1)
# ----------------------------------------------------------------------------
def _round_up(a, b):
    return (a + b - 1) // b * b


def outconv_pallas(x_nchw, w_oihw, bias):
    """x: (N, Cin, H, W) f32; w: (Cout, Cin, 1, 1) f32; bias: (Cout,) f32."""
    N, Cin, H, W = x_nchw.shape
    Cout = w_oihw.shape[0]
    M = N * H * W

    # NCHW -> NHWC -> (M, Cin): channels land on the lane dim (fast axis).
    x = jnp.transpose(x_nchw, (0, 2, 3, 1)).reshape(M, Cin).astype(jnp.float32)

    # Pad Cout to a multiple of 128 -> lane-dense output, no masked vst.
    Cp = _round_up(max(Cout, 128), 128)
    tc = 256 if Cp % 256 == 0 else 128          # 256-wide N tiles on v6e/v7x

    w = jnp.transpose(w_oihw.reshape(Cout, Cin), (1, 0))        # (Cin, Cout)
    w = jnp.pad(w, ((0, 0), (0, Cp - Cout))).astype(jnp.bfloat16)
    b = jnp.pad(bias.astype(jnp.float32), (0, Cp - Cout)).reshape(1, Cp)

    # M tiling: multiple of 8 sublanes; prefer >= 2 tiles so both v7x
    # TensorCores get work via the "parallel" grid axis.
    M8 = _round_up(M, 8)
    tm = 256 if M8 >= 512 else M8
    Mp = _round_up(M, tm)
    if Mp != M:
        x = jnp.pad(x, ((0, Mp - M), (0, 0)))

    out = pl.pallas_call(
        _outconv_kernel,
        out_shape=jax.ShapeDtypeStruct((Mp, Cp), jnp.float32),
        grid=(Mp // tm, Cp // tc),
        in_specs=[
            pl.BlockSpec((tm, Cin), lambda i, j: (i, 0)),
            pl.BlockSpec((Cin, tc), lambda i, j: (0, j)),
            pl.BlockSpec((1, tc), lambda i, j: (0, j)),
        ],
        out_specs=pl.BlockSpec((tm, tc), lambda i, j: (i, j)),
        compiler_params=pltpu.CompilerParams(
            dimension_semantics=("parallel", "parallel"),
            vmem_limit_bytes=32 * 1024 * 1024,   # blocks are tiny; safe on v5e/v7x
        ),
    )(x, w, b)

    # Strip M/Cout padding, back to NCHW.
    out = out[:M, :Cout].reshape(N, H, W, Cout)
    return jnp.transpose(out, (0, 3, 1, 2))


# ----------------------------------------------------------------------------
# Demo / self-check
# ----------------------------------------------------------------------------
if __name__ == "__main__":
    key = jax.random.PRNGKey(0)
    k1, k2, k3 = jax.random.split(key, 3)

    # Small shapes consistent with UNet's OutConv usage: 64 -> n_classes=2.
    N, Cin, H, W = 2, 64, 16, 16
    Cout = 2
    x = jax.random.normal(k1, (N, Cin, H, W), jnp.float32)
    w = jax.random.normal(k2, (Cout, Cin, 1, 1), jnp.float32) / math.sqrt(Cin)
    b = jax.random.normal(k3, (Cout,), jnp.float32) * 0.01

    out = jax.jit(outconv_pallas)(x, w, b)
    jax.block_until_ready(out)
    assert out.shape == (N, Cout, H, W)

    # Reference (f32 XLA). bf16 MXU operands -> small numerical deviation.
    ref = (jnp.einsum("nchw,oc->nohw", x, w.reshape(Cout, Cin))
           + b[None, :, None, None])
    max_err = float(jnp.max(jnp.abs(out - ref)))
    assert max_err < 1e-1, f"max abs error too large: {max_err}"

    print("KERNEL_OK")
</pallas_src>

<mosaic_0001>
module attributes {stable_mosaic.version = 11 : i64} {
  func.func @_outconv_kernel(%arg0: i32, %arg1: i32, %arg2: memref<256x64xf32, #tpu.memory_space<vmem>>, %arg3: memref<64x128xbf16, #tpu.memory_space<vmem>>, %arg4: memref<1x128xf32, #tpu.memory_space<vmem>>, %arg5: memref<256x128xf32, #tpu.memory_space<vmem>>) attributes {dimension_semantics = [#tpu.dimension_semantics<parallel>, #tpu.dimension_semantics<parallel>], iteration_bounds = array<i64: 2, 1>, scalar_prefetch = 0 : i64, scratch_operands = 0 : i64, tpu.core_type = #tpu.core_type<tc>, window_params = [{transform_indices = @transform_0, window_bounds = array<i64: 256, 64>}, {transform_indices = @transform_1, window_bounds = array<i64: 64, 128>}, {transform_indices = @transform_2, window_bounds = array<i64: 1, 128>}, {transform_indices = @transform_3, window_bounds = array<i64: 256, 128>}]} {
    %c0 = arith.constant 0 : index
    %c0_0 = arith.constant 0 : index
    %0 = vector.load %arg2[%c0, %c0_0] : memref<256x64xf32, #tpu.memory_space<vmem>>, vector<256x64xf32>
    %1 = arith.truncf %0 : vector<256x64xf32> to vector<256x64xbf16>
    %c0_1 = arith.constant 0 : index
    %c0_2 = arith.constant 0 : index
    %2 = vector.load %arg3[%c0_1, %c0_2] : memref<64x128xbf16, #tpu.memory_space<vmem>>, vector<64x128xbf16>
    %cst = arith.constant dense<0.000000e+00> : vector<256x128xf32>
    %3 = tpu.matmul %1, %2, %cst {dimension_numbers = #tpu.dot_dimension_numbers<[1], [0], [0], [1], [0, 0, 1, 1], [], []>} : vector<256x64xbf16>, vector<64x128xbf16>, vector<256x128xf32> -> vector<256x128xf32>
    %c0_3 = arith.constant 0 : index
    %c0_4 = arith.constant 0 : index
    %4 = vector.load %arg4[%c0_3, %c0_4] : memref<1x128xf32, #tpu.memory_space<vmem>>, vector<1x128xf32>
    %5 = vector.broadcast %4 : vector<1x128xf32> to vector<256x128xf32>
    %6 = arith.addf %3, %5 : vector<256x128xf32>
    %c0_5 = arith.constant 0 : index
    %c0_6 = arith.constant 0 : index
    %7 = vector.load %arg5[%c0_5, %c0_6] : memref<256x128xf32, #tpu.memory_space<vmem>>, vector<256x128xf32>
    tpu.vector_store %arg5[%c0_5, %c0_6], %6 {strides = array<i32>} : memref<256x128xf32, #tpu.memory_space<vmem>>, vector<256x128xf32>,
    return
  }
  func.func @transform_0(%arg0: i32, %arg1: i32) -> (i32, i32) {
    %c0_i32 = arith.constant 0 : i32
    %c0_i32_0 = arith.constant 0 : i32
    return %arg0, %c0_i32 : i32, i32
  }
  func.func @transform_1(%arg0: i32, %arg1: i32) -> (i32, i32) {
    %c0_i32 = arith.constant 0 : i32
    %c0_i32_0 = arith.constant 0 : i32
    return %c0_i32, %arg1 : i32, i32
  }
  func.func @transform_2(%arg0: i32, %arg1: i32) -> (i32, i32) {
    %c0_i32 = arith.constant 0 : i32
    %c0_i32_0 = arith.constant 0 : i32
    return %c0_i32, %arg1 : i32, i32
  }
  func.func @transform_3(%arg0: i32, %arg1: i32) -> (i32, i32) {
    %c0_i32 = arith.constant 0 : i32
    return %arg0, %arg1 : i32, i32
  }
}

</mosaic_0001>

<llo_original>
// kernel: outconv_pallas.1
$region0: #{outconv_pallas.1}
  #allocation0 [shape = 'u32[]', space=smem, size = 0x4, offset = 0x4, fixed_abs, tag = 'smem constant byte address 0x4 - core index']
  #allocation1 [shape = 'u32[144,128]{1,0:T(1,128)}', space=vmem, size = 0x12000, scoped, tag = 'internal scratch']
  %s0 = inlined_call_operand.hbm [shape: f32[512,64], index: 0, kind: input, shape index: {}]
  %s1 = inlined_call_operand.vmem [shape: bf16[64,128], index: 1, kind: input, shape index: {}]
  %s2 = inlined_call_operand.vmem [shape: f32[1,128], index: 2, kind: input, shape index: {}]
  %s3 = inlined_call_operand.vmem [shape: f32[512,128], index: 3, kind: output, shape index: {}]
  %s4 = sld [smem:[#allocation0]]
  $region49: #{outconv_pallas.1} parent=0
    _
  %s6 = ssub.s32 1, %s4
  %s7 = scalar_select 0, %s6, %s4
  $region1: #{outconv_pallas.1} parent=0
    #allocation2 [shape = 'u8[262144]{0}', space=vmem, size = 0x40000, scoped, tag = 'input window, operand 0']
    #allocation3 [shape = 's32[2]{0}', space=sflag, size = 0x8, scoped, tag = 'scoped memory for outconv_pallas.1']
    %8 = vsyncpa [#allocation3], 0
    %s9 = scalar_lea.sflag [#allocation3], 1
    %10 = vsyncpa %s9, 0
    loop: start=0, step=1, limit=4
    $region2: #{outconv_pallas.1} parent=1 // loop_pre_header
      _
    $region3: #{outconv_pallas.1} parent=1 // loop_header
      %s12 = sphi 0, %s16
      %p13 = scmp.ge.s32.totalorder %s12, 4
      %s19 = sphi 0, %s31
      %s20 = sphi 0, %s27
      %s21 = sphi 0, %s19
      %s22 = sphi 0, %s20
      %s23 = sphi 0, %s21
      %s24 = sphi 0, %s22
      %s34 = sphi 0, %s36
      %s37 = sphi 0, %s34
      %s38 = sphi 0, %s37
      %s54 = sphi 0, %s38
      %s60 = sphi 0, %s62
      %s63 = sphi 0, %s60
      %s64 = sphi 0, %s63
      %s80 = sphi 0, %s64
      %s86 = sphi 0, %s88
      %s89 = sphi 0, %s86
      %s90 = sphi 0, %s89
      %s106 = sphi 0, %s90
      %s114 = sphi 0, %s116
      %s117 = sphi 0, %s114
      %s118 = sphi 0, %s117
      %s134 = sphi 0, %s118
    $region4: #{outconv_pallas.1} parent=1 // loop_header_branch
      %15 = sbr.rel (%p13) target = $region8
    $region5: #{outconv_pallas.1} parent=1 // loop_body
      %s17 = ssub.s32 %s12, 1
      %s18 = ssub.s32 %s12, 2
      %s25 = sadd.s32 1, %s20
      %p26 = scmp.ge.s32.totalorder %s25, 1
      %s27 = scalar_select %p26, 0, %s25
      %s28 = sadd.s32 1, %s19
      %s29 = scalar_select %p26, %s28, %s19
      %p30 = scmp.ge.s32.totalorder %s29, 2
      %s31 = scalar_select %p30, 0, %s29
      %s32 = ssub.s32 %s19, %s31
      %p33 = scmp.eq.s32.totalorder %s32, 0
      %s35 = sadd.s32 %s34, 1
      %s36 = scalar_select %p33, %s34, %s35
      %p39 = pneg %p33
      %p40 = scmp.eq.s32.totalorder %s12, 1
      %p41 = por %p39, %p40
      %p42 = scmp.ne.s32.totalorder %s34, %s37
      %p43 = scmp.eq.s32.totalorder %s12, 0
      %p44 = por %p42, %p43
      %p45 = scmp.ne.s32.totalorder %s34, %s37
      %p46 = scmp.eq.s32.totalorder %s17, 1
      %p47 = por %p45, %p46
      %p48 = scmp.ne.s32.totalorder %s37, %s38
      %p49 = scmp.eq.s32.totalorder %s17, 0
      %p50 = por %p48, %p49
      %p51 = scmp.ne.s32.totalorder %s37, %s38
      %p52 = scmp.eq.s32.totalorder %s18, 1
      %p53 = por %p51, %p52
      %p55 = scmp.ne.s32.totalorder %s38, %s54
      %p56 = scmp.eq.s32.totalorder %s18, 0
      %p57 = por %p55, %p56
      %s58 = ssub.s32 %s20, %s27
      %p59 = scmp.eq.s32.totalorder %s58, 0
      %s61 = sadd.s32 %s60, 1
      %s62 = scalar_select %p59, %s60, %s61
      %p65 = pneg %p59
      %p66 = scmp.eq.s32.totalorder %s12, 1
      %p67 = por %p65, %p66
      %p68 = scmp.ne.s32.totalorder %s60, %s63
      %p69 = scmp.eq.s32.totalorder %s12, 0
      %p70 = por %p68, %p69
      %p71 = scmp.ne.s32.totalorder %s60, %s63
      %p72 = scmp.eq.s32.totalorder %s17, 1
      %p73 = por %p71, %p72
      %p74 = scmp.ne.s32.totalorder %s63, %s64
      %p75 = scmp.eq.s32.totalorder %s17, 0
      %p76 = por %p74, %p75
      %p77 = scmp.ne.s32.totalorder %s63, %s64
      %p78 = scmp.eq.s32.totalorder %s18, 1
      %p79 = por %p77, %p78
      %p81 = scmp.ne.s32.totalorder %s64, %s80
      %p82 = scmp.eq.s32.totalorder %s18, 0
      %p83 = por %p81, %p82
      %s84 = ssub.s32 %s20, %s27
      %p85 = scmp.eq.s32.totalorder %s84, 0
      %s87 = sadd.s32 %s86, 1
      %s88 = scalar_select %p85, %s86, %s87
      %p91 = pneg %p85
      %p92 = scmp.eq.s32.totalorder %s12, 1
      %p93 = por %p91, %p92
      %p94 = scmp.ne.s32.totalorder %s86, %s89
      %p95 = scmp.eq.s32.totalorder %s12, 0
      %p96 = por %p94, %p95
      %p97 = scmp.ne.s32.totalorder %s86, %s89
      %p98 = scmp.eq.s32.totalorder %s17, 1
      %p99 = por %p97, %p98
      %p100 = scmp.ne.s32.totalorder %s89, %s90
      %p101 = scmp.eq.s32.totalorder %s17, 0
      %p102 = por %p100, %p101
      %p103 = scmp.ne.s32.totalorder %s89, %s90
      %p104 = scmp.eq.s32.totalorder %s18, 1
      %p105 = por %p103, %p104
      %p107 = scmp.ne.s32.totalorder %s90, %s106
      %p108 = scmp.eq.s32.totalorder %s18, 0
      %p109 = por %p107, %p108
      %s110 = ssub.s32 %s19, %s31
      %s111 = ssub.s32 %s20, %s27
      %s112 = sor.u32 %s110, %s111
      %p113 = scmp.eq.s32.totalorder %s112, 0
      %s115 = sadd.s32 %s114, 1
      %s116 = scalar_select %p113, %s114, %s115
      %p119 = pneg %p113
      %p120 = scmp.eq.s32.totalorder %s12, 1
      %p121 = por %p119, %p120
      %p122 = scmp.ne.s32.totalorder %s114, %s117
      %p123 = scmp.eq.s32.totalorder %s12, 0
      %p124 = por %p122, %p123
      %p125 = scmp.ne.s32.totalorder %s114, %s117
      %p126 = scmp.eq.s32.totalorder %s17, 1
      %p127 = por %p125, %p126
      %p128 = scmp.ne.s32.totalorder %s117, %s118
      %p129 = scmp.eq.s32.totalorder %s17, 0
      %p130 = por %p128, %p129
      %p131 = scmp.ne.s32.totalorder %s117, %s118
      %p132 = scmp.eq.s32.totalorder %s18, 1
      %p133 = por %p131, %p132
      %p135 = scmp.ne.s32.totalorder %s118, %s134
      %p136 = scmp.eq.s32.totalorder %s18, 0
      %p137 = por %p135, %p136
      %p138 = scmp.le.s32.totalorder 1, %s12
      %p139 = scmp.lt.s32.totalorder %s12, 3
      %p140 = pnand %p138, %p139
      %p141 = pneg %p140
      // Predicated region
      $region9: #{outconv_pallas.1} parent=5 // pred_check
        _
      $region10: #{outconv_pallas.1} parent=5 // pred_check_branch
        %143 = sbr.rel (%p140) target = $region12
      $region11: #{outconv_pallas.1} parent=5 // pred_region
        %s144 = ssub.s32 %s12, 1
        // Predicated region
        $region13: #{outconv_pallas.1} parent=11 // pred_check
          %p145 = pneg %p76
        $region14: #{outconv_pallas.1} parent=11 // pred_check_branch
          %147 = sbr.rel (%p145) target = $region16
        $region15: #{outconv_pallas.1} parent=11 // pred_region
          %p148 = scmp.lt.s32.totalorder %s22, 0
          %s149 = scalar_select %p148, %s22, 0
          %s150 = smul.addr %s149, 4
          %s151 = scalar_lea.vmem %s1, %s150
        $region16: #{outconv_pallas.1} parent=11 // pred_fallthru
          _
        // Predicated region
        $region17: #{outconv_pallas.1} parent=11 // pred_check
          %p152 = pneg %p102
        $region18: #{outconv_pallas.1} parent=11 // pred_check_branch
          %154 = sbr.rel (%p152) target = $region20
        $region19: #{outconv_pallas.1} parent=11 // pred_region
          %p155 = scmp.lt.s32.totalorder %s22, 0
          %s156 = scalar_select %p155, %s22, 0
          %s157 = scalar_lea.vmem %s2, %s156
        $region20: #{outconv_pallas.1} parent=11 // pred_fallthru
          _
      $region12: #{outconv_pallas.1} parent=5 // pred_fallthru
        _
      %p158 = scmp.lt.s32.totalorder %s12, 2
      // Predicated region
      $region21: #{outconv_pallas.1} parent=5 // pred_check
        %p159 = pneg %p158
      $region22: #{outconv_pallas.1} parent=5 // pred_check_branch
        %161 = sbr.rel (%p159) target = $region24
      $region23: #{outconv_pallas.1} parent=5 // pred_region
        // Predicated region
        $region25: #{outconv_pallas.1} parent=23 // pred_check
          %p162 = pneg %p44
        $region26: #{outconv_pallas.1} parent=23 // pred_check_branch
          %164 = sbr.rel (%p162) target = $region28
        $region27: #{outconv_pallas.1} parent=23 // pred_region
          %s165 = sand.u32 %s34, 1
          %s166 = scalar_lea.sflag [#allocation3], %s165
          %s167 = sand.u32 %s34, 1
          %s168 = smul.addr %s167, 256
          %s169 = scalar_lea.vmem [#allocation2], %s168
          %s170 = smul.u32 32, %s19
          %s172 = ssub.s32 4096, 4096
          %173 = vsyncadd %s166, %s172
          %s174 = smul.addr %s170, 128
          %s175 = scalar_lea.hbm %s0, %s174
          %s176 = sshll.u32 %s169, 4
          %s177 = int_to_ptr.vmem [resolvable:$true] %s176
          %182 = dma.hbm_to_vmem [thread:$0]  %s175, 4096, %s177, %s166, 128, 128, 8
        $region28: #{outconv_pallas.1} parent=23 // pred_fallthru
          _
      $region24: #{outconv_pallas.1} parent=5 // pred_fallthru
        _
      %p183 = scmp.le.s32.totalorder 1, %s12
      %p184 = scmp.lt.s32.totalorder %s12, 3
      %p185 = pnand %p183, %p184
      %p186 = pneg %p185
      // Predicated region
      $region29: #{outconv_pallas.1} parent=5 // pred_check
        _
      $region30: #{outconv_pallas.1} parent=5 // pred_check_branch
        %188 = sbr.rel (%p185) target = $region32
      $region31: #{outconv_pallas.1} parent=5 // pred_region
        %s189 = ssub.s32 %s12, 1
        %s190 = sand.u32 %s37, 1
        %s191 = scalar_lea.sflag [#allocation3], %s190
        %s192 = sand.u32 %s37, 1
        %s193 = smul.addr %s192, 256
        %s194 = scalar_lea.vmem [#allocation2], %s193
        // Predicated region
        $region33: #{outconv_pallas.1} parent=31 // pred_check
          %p195 = pneg %p50
        $region34: #{outconv_pallas.1} parent=31 // pred_check_branch
          %197 = sbr.rel (%p195) target = $region36
        $region35: #{outconv_pallas.1} parent=31 // pred_region
          %198 = dma.done %s191, 4096
        $region36: #{outconv_pallas.1} parent=31 // pred_fallthru
          _
        %s199 = sand.u32 %s37, 1
        %s200 = scalar_lea.sflag [#allocation3], %s199
        %s201 = sand.u32 %s37, 1
        %s202 = smul.addr %s201, 256
        %s203 = scalar_lea.vmem [#allocation2], %s202
        %p204 = pneg %p50
        %p205 = pneg %p47
        %p206 = scmp.lt.s32.totalorder %s22, 0
        %s207 = scalar_select %p206, %s22, 0
        %s208 = smul.addr %s207, 4
        %s209 = scalar_lea.vmem %s1, %s208
        %p210 = pneg %p76
        %p211 = pneg %p73
        %p212 = scmp.lt.s32.totalorder %s22, 0
        %s213 = scalar_select %p212, %s22, 0
        %s214 = scalar_lea.vmem %s2, %s213
        %p215 = pneg %p102
        %p216 = pneg %p99
        %p217 = pneg %p130
        %p218 = pneg %p127
        %s219 = smul.u32 32, %s21
        %p220 = scmp.lt.s32.totalorder %s219, 63
        %s221 = scalar_select %p220, %s219, 63
        %p222 = scmp.lt.s32.totalorder %s22, 0
        %s223 = scalar_select %p222, %s22, 0
        %s224 = sadd.s32 %s223, %s221
        %s225 = smul.addr %s224, 8
        %s226 = scalar_lea.vmem %s3, %s225
        %s227 = smul.u32 32, %s21
        %p228 = scmp.lt.s32.totalorder %s22, 0
        %s229 = scalar_select %p228, %s22, 0
        %s230 = smul.addr %s229, 4
        %s231 = scalar_lea.vmem %s1, %s230
        %p232 = scmp.lt.s32.totalorder %s22, 0
        %s233 = scalar_select %p232, %s22, 0
        %s234 = scalar_lea.vmem %s2, %s233
        %s235 = smul.u32 32, %s21
        %p236 = scmp.lt.s32.totalorder %s235, 63
        %s237 = scalar_select %p236, %s235, 63
        %p238 = scmp.lt.s32.totalorder %s22, 0
        %s239 = scalar_select %p238, %s22, 0
        %s240 = sadd.s32 %s239, %s237
        %s241 = smul.addr %s240, 8
        %s242 = scalar_lea.vmem %s3, %s241
        %s243 = smul.u32 32, %s21
        %v245 = vld [vmem:[%s194] sm:$0xff]
        %v246 = vld [vmem:[%s194 + $0x8] sm:$0xff]
        %v247 = vld [vmem:[%s194 + $0x10] sm:$0xff]
        %v248 = vld [vmem:[%s194 + $0x18] sm:$0xff]
        %v249 = vld [vmem:[%s194 + $0x20] sm:$0xff]
        %v250 = vld [vmem:[%s194 + $0x28] sm:$0xff]
        %v251 = vld [vmem:[%s194 + $0x30] sm:$0xff]
        %v252 = vld [vmem:[%s194 + $0x38] sm:$0xff]
        %v253 = vld [vmem:[%s194 + $0x40] sm:$0xff]
        %v254 = vld [vmem:[%s194 + $0x48] sm:$0xff]
        %v255 = vld [vmem:[%s194 + $0x50] sm:$0xff]
        %v256 = vld [vmem:[%s194 + $0x58] sm:$0xff]
        %v257 = vld [vmem:[%s194 + $0x60] sm:$0xff]
        %v258 = vld [vmem:[%s194 + $0x68] sm:$0xff]
        %v259 = vld [vmem:[%s194 + $0x70] sm:$0xff]
        %v260 = vld [vmem:[%s194 + $0x78] sm:$0xff]
        %v261 = vld [vmem:[%s194 + $0x80] sm:$0xff]
        %v262 = vld [vmem:[%s194 + $0x88] sm:$0xff]
        %v263 = vld [vmem:[%s194 + $0x90] sm:$0xff]
        %v264 = vld [vmem:[%s194 + $0x98] sm:$0xff]
        %v265 = vld [vmem:[%s194 + $0xa0] sm:$0xff]
        %v266 = vld [vmem:[%s194 + $0xa8] sm:$0xff]
        %v267 = vld [vmem:[%s194 + $0xb0] sm:$0xff]
        %v268 = vld [vmem:[%s194 + $0xb8] sm:$0xff]
        %v269 = vld [vmem:[%s194 + $0xc0] sm:$0xff]
        %v270 = vld [vmem:[%s194 + $0xc8] sm:$0xff]
        %v271 = vld [vmem:[%s194 + $0xd0] sm:$0xff]
        %v272 = vld [vmem:[%s194 + $0xd8] sm:$0xff]
        %v273 = vld [vmem:[%s194 + $0xe0] sm:$0xff]
        %v274 = vld [vmem:[%s194 + $0xe8] sm:$0xff]
        %v275 = vld [vmem:[%s194 + $0xf0] sm:$0xff]
        %v276 = vld [vmem:[%s194 + $0xf8] sm:$0xff]
        %v277 = vpack.c.bf16 %v246, %v245
        %v278 = vpack.c.bf16 %v248, %v247
        %v279 = vpack.c.bf16 %v250, %v249
        %v280 = vpack.c.bf16 %v252, %v251
        %v281 = vpack.c.bf16 %v254, %v253
        %v282 = vpack.c.bf16 %v256, %v255
        %v283 = vpack.c.bf16 %v258, %v257
        %v284 = vpack.c.bf16 %v260, %v259
        %v285 = vpack.c.bf16 %v262, %v261
        %v286 = vpack.c.bf16 %v264, %v263
        %v287 = vpack.c.bf16 %v266, %v265
        %v288 = vpack.c.bf16 %v268, %v267
        %v289 = vpack.c.bf16 %v270, %v269
        %v290 = vpack.c.bf16 %v272, %v271
        %v291 = vpack.c.bf16 %v274, %v273
        %v292 = vpack.c.bf16 %v276, %v275
        %v293 = vld [vmem:[%s231] sm:$0xf]
        %v294 = vld [vmem:[%s231 + $0x4] sm:$0xf]
        %v295 = vld [vmem:[%s231 + $0x8] sm:$0xf]
        %v296 = vld [vmem:[%s231 + $0xc] sm:$0xf]
        %v297 = vld [vmem:[%s231 + $0x10] sm:$0xf]
        %v298 = vld [vmem:[%s231 + $0x14] sm:$0xf]
        %v299 = vld [vmem:[%s231 + $0x18] sm:$0xf]
        %v300 = vld [vmem:[%s231 + $0x1c] sm:$0xf]
        %v301 = vld [vmem:[%s234] sm:$0x1]
        %v303 = vlaneseq
        %v304 = vshrl.u32 %v303, 7
        %v305 = vsub.s32 0, %v304
        %v306 = vrot.slane %v301, %v305
        %v316 = vunpack.c.l.b16 %v293
        %v317 = vunpack.c.l.b16 %v294
        %v318 = vunpack.c.l.b16 %v295
        %v319 = vunpack.c.l.b16 %v296
        %v320 = vunpack.c.l.b16 %v297
        %v321 = vunpack.c.l.b16 %v298
        %v322 = vunpack.c.l.b16 %v299
        %v323 = vunpack.c.l.b16 %v300
        %v324 = vpack.c.b16 %v317, %v316
        %v325 = vpack.c.b16 %v319, %v318
        %v326 = vpack.c.b16 %v321, %v320
        %v327 = vpack.c.b16 %v323, %v322
        %vm332 = vcmask 523264
        %v334 = vsel %vm332, %v277, 0
        %v337 = vsel %vm332, %v278, 0
        %v340 = vsel %vm332, %v279, 0
        %v343 = vsel %vm332, %v280, 0
        %v346 = vsel %vm332, %v281, 0
        %v349 = vsel %vm332, %v282, 0
        %v352 = vsel %vm332, %v283, 0
        %v355 = vsel %vm332, %v284, 0
        %v358 = vsel %vm332, %v285, 0
        %v361 = vsel %vm332, %v286, 0
        %v364 = vsel %vm332, %v287, 0
        %v367 = vsel %vm332, %v288, 0
        %v370 = vsel %vm332, %v289, 0
        %v373 = vsel %vm332, %v290, 0
        %v376 = vsel %vm332, %v291, 0
        %v379 = vsel %vm332, %v292, 0
        %381 = vmatprep.subr.bf16.mxu0 0
        %382 = vmatpush1.bf16.msra.mxu0 %v324
        %383 = vmatprep.subr.bf16.mxu0 0
        %384 = vmatpush1.bf16.msra.mxu0 %v325
        %385 = vmatprep.subr.bf16.mxu0 0
        %386 = vmatpush1.bf16.msra.mxu0 %v326
        %387 = vmatprep.subr.bf16.mxu0 0
        %388 = vmatpush1.bf16.msra.mxu0 %v327
        %389 = vmatprep.subr.bf16.mxu0 0
        %390 = vmatpush1.bf16.msra.mxu0 0
        %391 = vmatprep.subr.bf16.mxu0 0
        %392 = vmatpush1.bf16.msra.mxu0 0
        %393 = vmatprep.subr.bf16.mxu0 0
        %394 = vmatpush1.bf16.msra.mxu0 0
        %395 = vmatprep.subr.bf16.mxu0 0
        %396 = vmatpush1.bf16.msra.mxu0 0
        %397 = vmatprep.subr.bf16.mxu0 0
        %398 = vmatpush1.bf16.msra.mxu0 0
        %399 = vmatprep.subr.bf16.mxu0 0
        %400 = vmatpush1.bf16.msra.mxu0 0
        %401 = vmatprep.subr.bf16.mxu0 0
        %402 = vmatpush1.bf16.msra.mxu0 0
        %403 = vmatprep.subr.bf16.mxu0 0
        %404 = vmatpush1.bf16.msra.mxu0 0
        %405 = vmatprep.subr.bf16.mxu0 0
        %406 = vmatpush1.bf16.msra.mxu0 0
        %407 = vmatprep.subr.bf16.mxu0 0
        %408 = vmatpush1.bf16.msra.mxu0 0
        %409 = vmatprep.subr.bf16.mxu0 0
        %410 = vmatpush1.bf16.msra.mxu0 0
        %411 = vmatprep.subr.bf16.mxu0 0
        %412 = vmatpush1.bf16.msra.mxu0 0
        %413 = vmatprep.mubr.bf16.mxu0 0
        %414 = vmatmul.mubr.bf16.gmra.mrb[0].mxu0 %v334
        %v415 = vpop.f32.mrb[0].mxu0
        %v416 = vadd.f32 %v306, %v415
        %v417 = vpop.f32.mrb[0].mxu0
        %v418 = vpop.f32.mrb[0].mxu0
        %v419 = vadd.f32 %v306, %v418
        %v420 = vpop.f32.mrb[0].mxu0
        %421 = vmatprep.mubr.bf16.mxu0 0
        %422 = vmatmul.mubr.bf16.gmra.mrb[0].mxu0 %v337
        %v423 = vpop.f32.mrb[0].mxu0
        %v424 = vadd.f32 %v306, %v423
        %v425 = vpop.f32.mrb[0].mxu0
        %v426 = vpop.f32.mrb[0].mxu0
        %v427 = vadd.f32 %v306, %v426
        %v428 = vpop.f32.mrb[0].mxu0
        %429 = vmatprep.mubr.bf16.mxu0 0
        %430 = vmatmul.mubr.bf16.gmra.mrb[0].mxu0 %v340
        %v431 = vpop.f32.mrb[0].mxu0
        %v432 = vadd.f32 %v306, %v431
        %v433 = vpop.f32.mrb[0].mxu0
        %v434 = vpop.f32.mrb[0].mxu0
        %v435 = vadd.f32 %v306, %v434
        %v436 = vpop.f32.mrb[0].mxu0
        %437 = vmatprep.mubr.bf16.mxu0 0
        %438 = vmatmul.mubr.bf16.gmra.mrb[0].mxu0 %v343
        %v439 = vpop.f32.mrb[0].mxu0
        %v440 = vadd.f32 %v306, %v439
        %v441 = vpop.f32.mrb[0].mxu0
        %v442 = vpop.f32.mrb[0].mxu0
        %v443 = vadd.f32 %v306, %v442
        %v444 = vpop.f32.mrb[0].mxu0
        %445 = vmatprep.mubr.bf16.mxu0 0
        %446 = vmatmul.mubr.bf16.gmra.mrb[0].mxu0 %v346
        %v447 = vpop.f32.mrb[0].mxu0
        %v448 = vadd.f32 %v306, %v447
        %v449 = vpop.f32.mrb[0].mxu0
        %v450 = vpop.f32.mrb[0].mxu0
        %v451 = vadd.f32 %v306, %v450
        %v452 = vpop.f32.mrb[0].mxu0
        %453 = vmatprep.mubr.bf16.mxu0 0
        %454 = vmatmul.mubr.bf16.gmra.mrb[0].mxu0 %v349
        %v455 = vpop.f32.mrb[0].mxu0
        %v456 = vadd.f32 %v306, %v455
        %v457 = vpop.f32.mrb[0].mxu0
        %v458 = vpop.f32.mrb[0].mxu0
        %v459 = vadd.f32 %v306, %v458
        %v460 = vpop.f32.mrb[0].mxu0
        %461 = vmatprep.mubr.bf16.mxu0 0
        %462 = vmatmul.mubr.bf16.gmra.mrb[0].mxu0 %v352
        %v463 = vpop.f32.mrb[0].mxu0
        %v464 = vadd.f32 %v306, %v463
        %v465 = vpop.f32.mrb[0].mxu0
        %v466 = vpop.f32.mrb[0].mxu0
        %v467 = vadd.f32 %v306, %v466
        %v468 = vpop.f32.mrb[0].mxu0
        %469 = vmatprep.mubr.bf16.mxu0 0
        %470 = vmatmul.mubr.bf16.gmra.mrb[0].mxu0 %v355
        %v471 = vpop.f32.mrb[0].mxu0
        %v472 = vadd.f32 %v306, %v471
        %v473 = vpop.f32.mrb[0].mxu0
        %v474 = vpop.f32.mrb[0].mxu0
        %v475 = vadd.f32 %v306, %v474
        %v476 = vpop.f32.mrb[0].mxu0
        %477 = vmatprep.mubr.bf16.mxu0 0
        %478 = vmatmul.mubr.bf16.gmra.mrb[0].mxu0 %v358
        %v479 = vpop.f32.mrb[0].mxu0
        %v480 = vadd.f32 %v306, %v479
        %v481 = vpop.f32.mrb[0].mxu0
        %v482 = vpop.f32.mrb[0].mxu0
        %v483 = vadd.f32 %v306, %v482
        %v484 = vpop.f32.mrb[0].mxu0
        %485 = vmatprep.mubr.bf16.mxu0 0
        %486 = vmatmul.mubr.bf16.gmra.mrb[0].mxu0 %v361
        %v487 = vpop.f32.mrb[0].mxu0
        %v488 = vadd.f32 %v306, %v487
        %v489 = vpop.f32.mrb[0].mxu0
        %v490 = vpop.f32.mrb[0].mxu0
        %v491 = vadd.f32 %v306, %v490
        %v492 = vpop.f32.mrb[0].mxu0
        %493 = vmatprep.mubr.bf16.mxu0 0
        %494 = vmatmul.mubr.bf16.gmra.mrb[0].mxu0 %v364
        %v495 = vpop.f32.mrb[0].mxu0
        %v496 = vadd.f32 %v306, %v495
        %v497 = vpop.f32.mrb[0].mxu0
        %v498 = vpop.f32.mrb[0].mxu0
        %v499 = vadd.f32 %v306, %v498
        %v500 = vpop.f32.mrb[0].mxu0
        %501 = vmatprep.mubr.bf16.mxu0 0
        %502 = vmatmul.mubr.bf16.gmra.mrb[0].mxu0 %v367
        %v503 = vpop.f32.mrb[0].mxu0
        %v504 = vadd.f32 %v306, %v503
        %v505 = vpop.f32.mrb[0].mxu0
        %v506 = vpop.f32.mrb[0].mxu0
        %v507 = vadd.f32 %v306, %v506
        %v508 = vpop.f32.mrb[0].mxu0
        %509 = vmatprep.mubr.bf16.mxu0 0
        %510 = vmatmul.mubr.bf16.gmra.mrb[0].mxu0 %v370
        %v511 = vpop.f32.mrb[0].mxu0
        %v512 = vadd.f32 %v306, %v511
        %v513 = vpop.f32.mrb[0].mxu0
        %v514 = vpop.f32.mrb[0].mxu0
        %v515 = vadd.f32 %v306, %v514
        %v516 = vpop.f32.mrb[0].mxu0
        %517 = vmatprep.mubr.bf16.mxu0 0
        %518 = vmatmul.mubr.bf16.gmra.mrb[0].mxu0 %v373
        %v519 = vpop.f32.mrb[0].mxu0
        %v520 = vadd.f32 %v306, %v519
        %v521 = vpop.f32.mrb[0].mxu0
        %v522 = vpop.f32.mrb[0].mxu0
        %v523 = vadd.f32 %v306, %v522
        %v524 = vpop.f32.mrb[0].mxu0
        %525 = vmatprep.mubr.bf16.mxu0 0
        %526 = vmatmul.mubr.bf16.gmra.mrb[0].mxu0 %v376
        %v527 = vpop.f32.mrb[0].mxu0
        %v528 = vadd.f32 %v306, %v527
        %v529 = vpop.f32.mrb[0].mxu0
        %v530 = vpop.f32.mrb[0].mxu0
        %v531 = vadd.f32 %v306, %v530
        %v532 = vpop.f32.mrb[0].mxu0
        %533 = vmatprep.mubr.bf16.mxu0 0
        %534 = vmatmul.mubr.bf16.gmra.mrb[0].mxu0 %v379
        %v535 = vpop.f32.mrb[0].mxu0
        %v536 = vadd.f32 %v306, %v535
        %v537 = vpop.f32.mrb[0].mxu0
        %v538 = vpop.f32.mrb[0].mxu0
        %v539 = vadd.f32 %v306, %v538
        %v540 = vpop.f32.mrb[0].mxu0
        %541 = vdwg.mxu0
        %542 = vst [vmem:[%s242] sm:$0xff] %v416
        %543 = vst [vmem:[%s242 + $0x8] sm:$0xff] %v419
        %544 = vst [vmem:[%s242 + $0x10] sm:$0xff] %v424
        %545 = vst [vmem:[%s242 + $0x18] sm:$0xff] %v427
        %546 = vst [vmem:[%s242 + $0x20] sm:$0xff] %v432
        %547 = vst [vmem:[%s242 + $0x28] sm:$0xff] %v435
        %548 = vst [vmem:[%s242 + $0x30] sm:$0xff] %v440
        %549 = vst [vmem:[%s242 + $0x38] sm:$0xff] %v443
        %550 = vst [vmem:[%s242 + $0x40] sm:$0xff] %v448
        %551 = vst [vmem:[%s242 + $0x48] sm:$0xff] %v451
        %552 = vst [vmem:[%s242 + $0x50] sm:$0xff] %v456
        %553 = vst [vmem:[%s242 + $0x58] sm:$0xff] %v459
        %554 = vst [vmem:[%s242 + $0x60] sm:$0xff] %v464
        %555 = vst [vmem:[%s242 + $0x68] sm:$0xff] %v467
        %556 = vst [vmem:[%s242 + $0x70] sm:$0xff] %v472
        %557 = vst [vmem:[%s242 + $0x78] sm:$0xff] %v475
        %558 = vst [vmem:[%s242 + $0x80] sm:$0xff] %v480
        %559 = vst [vmem:[%s242 + $0x88] sm:$0xff] %v483
        %560 = vst [vmem:[%s242 + $0x90] sm:$0xff] %v488
        %561 = vst [vmem:[%s242 + $0x98] sm:$0xff] %v491
        %562 = vst [vmem:[%s242 + $0xa0] sm:$0xff] %v496
        %563 = vst [vmem:[%s242 + $0xa8] sm:$0xff] %v499
        %564 = vst [vmem:[%s242 + $0xb0] sm:$0xff] %v504
        %565 = vst [vmem:[%s242 + $0xb8] sm:$0xff] %v507
        %566 = vst [vmem:[%s242 + $0xc0] sm:$0xff] %v512
        %567 = vst [vmem:[%s242 + $0xc8] sm:$0xff] %v515
        %568 = vst [vmem:[%s242 + $0xd0] sm:$0xff] %v520
        %569 = vst [vmem:[%s242 + $0xd8] sm:$0xff] %v523
        %570 = vst [vmem:[%s242 + $0xe0] sm:$0xff] %v528
        %571 = vst [vmem:[%s242 + $0xe8] sm:$0xff] %v531
        %572 = vst [vmem:[%s242 + $0xf0] sm:$0xff] %v536
        %573 = vst [vmem:[%s242 + $0xf8] sm:$0xff] %v539
        %s574 = smul.u32 32, %s21
        %p575 = scmp.lt.s32.totalorder %s574, 63
        %s576 = scalar_select %p575, %s574, 63
        %p577 = scmp.lt.s32.totalorder %s22, 0
        %s578 = scalar_select %p577, %s22, 0
        %s579 = sadd.s32 %s578, %s576
        %s580 = smul.addr %s579, 8
        %s581 = scalar_lea.vmem %s3, %s580
        // Predicated region
        $region37: #{outconv_pallas.1} parent=31 // pred_check
          %p582 = pneg %p127
        $region38: #{outconv_pallas.1} parent=31 // pred_check_branch
          %584 = sbr.rel (%p582) target = $region40
        $region39: #{outconv_pallas.1} parent=31 // pred_region
          %s585 = smul.u32 32, %s21
        $region40: #{outconv_pallas.1} parent=31 // pred_fallthru
          _
      $region32: #{outconv_pallas.1} parent=5 // pred_fallthru
        _
      %p586 = scmp.le.s32.totalorder 2, %s12
      // Predicated region
      $region41: #{outconv_pallas.1} parent=5 // pred_check
        %p587 = pneg %p586
      $region42: #{outconv_pallas.1} parent=5 // pred_check_branch
        %589 = sbr.rel (%p587) target = $region44
      $region43: #{outconv_pallas.1} parent=5 // pred_region
        %s590 = ssub.s32 %s12, 2
        // Predicated region
        $region45: #{outconv_pallas.1} parent=43 // pred_check
          %p591 = pneg %p133
        $region46: #{outconv_pallas.1} parent=43 // pred_check_branch
          %593 = sbr.rel (%p591) target = $region48
        $region47: #{outconv_pallas.1} parent=43 // pred_region
          %s594 = smul.u32 32, %s23
          %p595 = scmp.lt.s32.totalorder %s594, 63
          %s596 = scalar_select %p595, %s594, 63
          %p597 = scmp.lt.s32.totalorder %s24, 0
          %s598 = scalar_select %p597, %s24, 0
          %s599 = sadd.s32 %s598, %s596
          %s600 = smul.addr %s599, 8
          %s601 = scalar_lea.vmem %s3, %s600
        $region48: #{outconv_pallas.1} parent=43 // pred_fallthru
          _
      $region44: #{outconv_pallas.1} parent=5 // pred_fallthru
        _
    $region6: #{outconv_pallas.1} parent=1 // loop_footer
      %s16 = sadd.s32 1, %s12
    $region7: #{outconv_pallas.1} parent=1 // loop_footer_branch
      %11 = sbr.rel target = $region3
    $region8: #{outconv_pallas.1} parent=1 // loop_exit
      _
    %602 = vsyncpa [#allocation3], 1
    %s603 = scalar_lea.sflag [#allocation3], 1
    %604 = vsyncpa %s603, 1

</llo_original>
